<compile_context>
chip_gen: v6e
topology: v6e:2x2x1
jax: 0.10.0
libtpu: 0.0.40
codegen_flags: <defaults>
</compile_context>

<pallas_src>
import numpy as np
import jax
import jax.numpy as jnp
from jax.experimental import pallas as pl
from jax.experimental.pallas import tpu as pltpu


def _adaptive_avg_pool1d_matrix(L_in: int, L_out: int) -> jnp.ndarray:
    """Exact AdaptiveAvgPool1d as a (L_in, L_out) averaging matrix."""
    P = np.zeros((L_in, L_out), dtype=np.float32)
    for j in range(L_out):
        start = (j * L_in) // L_out                   # floor(j * L_in / L_out)
        end = -((-(j + 1) * L_in) // L_out)           # ceil((j+1) * L_in / L_out)
        P[start:end, j] = 1.0 / float(end - start)
    return jnp.asarray(P)


def _round_up(x: int, m: int) -> int:
    return ((x + m - 1) // m) * m


def _cdiv(a: int, b: int) -> int:
    return (a + b - 1) // b


def _vmem_capacity_bytes() -> int:
    """Per-TensorCore VMEM capacity; conservative (v7x-sized) fallback."""
    try:
        cap = int(pltpu.get_tpu_info().vmem_capacity_bytes)
        return max(32 << 20, min(cap, 128 << 20))
    except Exception:
        return 64 << 20


def _choose_tile_r(R: int, L_pad: int, H_pad: int, x_bytes: int,
                   budget_bytes: int, weight_resident_bytes: int) -> int:
    """Largest balanced row tile (multiple of 8) whose working set fits."""
    avail = max(budget_bytes - weight_resident_bytes, 1 << 20)
    # Per tile-row: double-buffered x-in + out tiles, plus f32/bf16 temporaries
    # (x bf16 copy, h f32/bf16, scores/product f32).
    per_row = 4 * L_pad * x_bytes + 12 * L_pad + 8 * H_pad
    tile_max = max(8, min(1024, ((avail // per_row) // 8) * 8))
    # Balance tiles across the real row count (minimize zero-row padding) and
    # keep >= 2 grid steps when R allows so the input/output DMA pipeline
    # actually overlaps and a multi-TensorCore chip (v7x) can shard the
    # "parallel" axis across cores.
    n_tiles = _cdiv(R, tile_max)
    if R >= 16:
        n_tiles = max(n_tiles, 2)
    tile_r = _round_up(_cdiv(R, n_tiles), 8)
    return tile_r


def _se_kernel(x_ref, pw1_ref, w2t_ref, o_ref):
    # x_ref:   (TILE_R, L_pad)  input rows (B*C flattened, lane-padded)
    # pw1_ref: (L_pad, H_pad)   fused AdaptiveAvgPool1d + Linear#1 (bf16)
    # w2t_ref: (H_pad, L_pad)   Linear#2 weight, transposed (bf16)
    x = x_ref[...]
    x_mx = x.astype(jnp.bfloat16)                               # MXU-native operand
    h = jnp.dot(x_mx, pw1_ref[...], preferred_element_type=jnp.float32)
    h = jnp.maximum(h, 0.0)                                     # ReLU
    s = jnp.dot(h.astype(jnp.bfloat16), w2t_ref[...],
                preferred_element_type=jnp.float32)
    s = jax.nn.sigmoid(s)                                       # EUP exp path
    o_ref[...] = (x.astype(jnp.float32) * s).astype(o_ref.dtype)


def _pallas_call_se(x2d, pw1, w2t, tile_r, n_tiles, L_pad, H_pad,
                    vmem_limit, cost, out_dtype, buffered_weights):
    R_pad = n_tiles * tile_r

    if buffered_weights:
        def w_spec(shape):
            return pl.BlockSpec(shape, lambda i: (0, 0),
                                pipeline_mode=pl.Buffered(1))
    else:
        def w_spec(shape):
            return pl.BlockSpec(shape, lambda i: (0, 0))

    return pl.pallas_call(
        _se_kernel,
        out_shape=jax.ShapeDtypeStruct((R_pad, L_pad), out_dtype),
        grid_spec=pltpu.PrefetchScalarGridSpec(
            num_scalar_prefetch=0,
            grid=(n_tiles,),
            in_specs=[
                pl.BlockSpec((tile_r, L_pad), lambda i: (i, 0)),   # x rows
                w_spec((L_pad, H_pad)),                            # PW1 resident
                w_spec((H_pad, L_pad)),                            # W2.T resident
            ],
            out_specs=pl.BlockSpec((tile_r, L_pad), lambda i: (i, 0)),
        ),
        compiler_params=pltpu.CompilerParams(
            dimension_semantics=("parallel",),
            vmem_limit_bytes=int(vmem_limit),
        ),
        cost_estimate=cost,
    )(x2d, pw1, w2t)


def squeeze_excite_pallas(x, pool_mat, w1, w2):
    """x: (B, C, L_in); pool_mat: (L_in, squeeze_to);
    w1: (hidden, squeeze_to); w2: (L_in, hidden)."""
    B, C, L_in = x.shape
    hidden = w1.shape[0]
    R = B * C

    # Fuse pooling matrix with Linear#1 on the host (both linear; exact up to
    # f32 rounding order).
    pw1 = jnp.dot(pool_mat.astype(jnp.float32),
                  w1.T.astype(jnp.float32))           # (L_in, hidden)
    w2t = w2.T.astype(jnp.float32)                    # (hidden, L_in)

    # Lane-dense layout: pad both L_in and hidden to multiples of 128.
    L_pad = _round_up(L_in, 128)
    H_pad = _round_up(hidden, 128)
    if (L_pad, H_pad) != (L_in, hidden):
        pw1 = jnp.pad(pw1, ((0, L_pad - L_in), (0, H_pad - hidden)))
        w2t = jnp.pad(w2t, ((0, H_pad - hidden), (0, L_pad - L_in)))

    # bf16 weights: native MXU operand format, halves weight VMEM/DMA bytes.
    pw1 = pw1.astype(jnp.bfloat16)
    w2t = w2t.astype(jnp.bfloat16)

    x_bytes = jnp.dtype(x.dtype).itemsize
    vmem_cap = _vmem_capacity_bytes()                 # 128 MiB v5e/v6e, 64 MiB v7x
    # ~96 MiB on 128 MiB chips, ~48 MiB on 64 MiB v7x TensorCores.
    vmem_limit = min((vmem_cap * 3) // 4, 100 << 20)
    budget = int(vmem_limit * 0.8)                    # headroom for compiler scratch

    # Resident weight footprint (two bf16 weights, single-buffered).
    weight_resident = 1 * 2 * (L_pad * H_pad) * 2
    # TODO(synk): stream weight K/N chunks from HBM (memory_space=pl.ANY +
    # pltpu.emit_pipeline) when the resident bf16 weights no longer fit the
    # VMEM budget (roughly L_in > ~4k on v7x).

    tile_r = _choose_tile_r(R, L_pad, H_pad, x_bytes, budget, weight_resident)
    n_tiles = _cdiv(R, tile_r)
    R_pad = n_tiles * tile_r

    x2d = x.reshape(R, L_in)
    if (R_pad, L_pad) != (R, L_in):
        x2d = jnp.pad(x2d, ((0, R_pad - R), (0, L_pad - L_in)))

    cost = pl.CostEstimate(
        flops=4 * R_pad * L_pad * H_pad + 2 * R_pad * L_pad,
        transcendentals=R_pad * L_pad,
        bytes_accessed=2 * R_pad * L_pad * x_bytes + 2 * 2 * L_pad * H_pad,
    )

    try:
        out2d = _pallas_call_se(x2d, pw1, w2t, tile_r, n_tiles, L_pad, H_pad,
                                vmem_limit, cost, x.dtype,
                                buffered_weights=True)
    except Exception:
        # Fallback for jax versions without BlockSpec(pipeline_mode=...):
        # default double-buffered weights (still correct, slightly more VMEM).
        out2d = _pallas_call_se(x2d, pw1, w2t, tile_r, n_tiles, L_pad, H_pad,
                                vmem_limit, cost, x.dtype,
                                buffered_weights=False)

    return out2d[:R, :L_in].reshape(B, C, L_in)


def squeeze_excite_ref(x, pool_mat, w1, w2):
    """Pure-JAX f32 reference mirroring the PyTorch module (unfused)."""
    xf = x.astype(jnp.float32)
    pooled = jnp.einsum("bcl,ls->bcs", xf, pool_mat)          # AdaptiveAvgPool1d
    h = jax.nn.relu(jnp.einsum("bcs,hs->bch", pooled, w1))    # Linear#1 + ReLU
    s = jax.nn.sigmoid(jnp.einsum("bch,lh->bcl", h, w2))      # Linear#2 + Sigmoid
    return (xf * s).astype(x.dtype)


if __name__ == "__main__":
    # Shapes implied by the module: x is (B, C, L_in) for AdaptiveAvgPool1d.
    B, C, L_in = 2, 4, 32
    squeeze_ratio = 0.1
    squeeze_to = max(int(L_in * squeeze_ratio), 1)    # = 3
    hidden = L_in // 2                                # = 16

    key = jax.random.PRNGKey(0)
    kx, k1, k2 = jax.random.split(key, 3)

    x = jax.random.normal(kx, (B, C, L_in), dtype=jnp.float32)
    # Deterministic synthetic weights (shapes match nn.Linear, bias=False).
    w1 = jax.random.normal(k1, (hidden, squeeze_to), dtype=jnp.float32) \
        * (1.0 / np.sqrt(squeeze_to))                 # Linear(squeeze_to -> hidden)
    w2 = jax.random.normal(k2, (L_in, hidden), dtype=jnp.float32) \
        * (1.0 / np.sqrt(hidden))                     # Linear(hidden -> L_in)

    pool_mat = _adaptive_avg_pool1d_matrix(L_in, squeeze_to)

    out = jax.block_until_ready(squeeze_excite_pallas(x, pool_mat, w1, w2))
    ref = squeeze_excite_ref(x, pool_mat, w1, w2)
    # bf16 MXU operands (f32 accumulation) -> looser tolerance vs f32 reference.
    np.testing.assert_allclose(np.asarray(out), np.asarray(ref),
                               rtol=2e-2, atol=2e-2)

    print("KERNEL_OK")
</pallas_src>

<mosaic_0001>
module attributes {stable_mosaic.version = 11 : i64} {
  func.func @_se_kernel(%arg0: i32, %arg1: memref<8x128xf32, #tpu.memory_space<vmem>>, %arg2: memref<128x128xbf16, #tpu.memory_space<vmem>>, %arg3: memref<128x128xbf16, #tpu.memory_space<vmem>>, %arg4: memref<8x128xf32, #tpu.memory_space<vmem>>) attributes {dimension_semantics = [#tpu.dimension_semantics<parallel>], iteration_bounds = array<i64: 1>, scalar_prefetch = 0 : i64, scratch_operands = 0 : i64, tpu.core_type = #tpu.core_type<tc>, window_params = [{transform_indices = @transform_0, window_bounds = array<i64: 8, 128>}, {pipeline_mode = #tpu.pipeline_mode<synchronous>, transform_indices = @transform_1, window_bounds = array<i64: 128, 128>}, {pipeline_mode = #tpu.pipeline_mode<synchronous>, transform_indices = @transform_2, window_bounds = array<i64: 128, 128>}, {transform_indices = @transform_3, window_bounds = array<i64: 8, 128>}]} {
    %c0 = arith.constant 0 : index
    %c0_0 = arith.constant 0 : index
    %0 = vector.load %arg1[%c0, %c0_0] : memref<8x128xf32, #tpu.memory_space<vmem>>, vector<8x128xf32>
    %1 = arith.truncf %0 : vector<8x128xf32> to vector<8x128xbf16>
    %c0_1 = arith.constant 0 : index
    %c0_2 = arith.constant 0 : index
    %2 = vector.load %arg2[%c0_1, %c0_2] : memref<128x128xbf16, #tpu.memory_space<vmem>>, vector<128x128xbf16>
    %cst = arith.constant dense<0.000000e+00> : vector<8x128xf32>
    %3 = tpu.matmul %1, %2, %cst {dimension_numbers = #tpu.dot_dimension_numbers<[1], [0], [0], [1], [0, 0, 1, 1], [], []>} : vector<8x128xbf16>, vector<128x128xbf16>, vector<8x128xf32> -> vector<8x128xf32>
    %cst_3 = arith.constant 0.000000e+00 : f32
    %4 = vector.broadcast %cst_3 : f32 to vector<8x128xf32>
    %5 = arith.maximumf %3, %4 : vector<8x128xf32>
    %6 = arith.truncf %5 : vector<8x128xf32> to vector<8x128xbf16>
    %c0_4 = arith.constant 0 : index
    %c0_5 = arith.constant 0 : index
    %7 = vector.load %arg3[%c0_4, %c0_5] : memref<128x128xbf16, #tpu.memory_space<vmem>>, vector<128x128xbf16>
    %cst_6 = arith.constant dense<0.000000e+00> : vector<8x128xf32>
    %8 = tpu.matmul %6, %7, %cst_6 {dimension_numbers = #tpu.dot_dimension_numbers<[1], [0], [0], [1], [0, 0, 1, 1], [], []>} : vector<8x128xbf16>, vector<128x128xbf16>, vector<8x128xf32> -> vector<8x128xf32>
    %9 = arith.negf %8 : vector<8x128xf32>
    %10 = math.exp %9 : vector<8x128xf32>
    %cst_7 = arith.constant 1.000000e+00 : f32
    %11 = vector.broadcast %cst_7 : f32 to vector<8x128xf32>
    %12 = arith.addf %11, %10 : vector<8x128xf32>
    %13 = arith.divf %11, %12 : vector<8x128xf32>
    %14 = arith.mulf %0, %13 : vector<8x128xf32>
    %c0_8 = arith.constant 0 : index
    %c0_9 = arith.constant 0 : index
    %15 = vector.load %arg4[%c0_8, %c0_9] : memref<8x128xf32, #tpu.memory_space<vmem>>, vector<8x128xf32>
    tpu.vector_store %arg4[%c0_8, %c0_9], %14 {strides = array<i32>} : memref<8x128xf32, #tpu.memory_space<vmem>>, vector<8x128xf32>,
    return
  }
  func.func @transform_0(%arg0: i32) -> (i32, i32) {
    %c0_i32 = arith.constant 0 : i32
    %c0_i32_0 = arith.constant 0 : i32
    return %arg0, %c0_i32 : i32, i32
  }
  func.func @transform_1(%arg0: i32) -> (i32, i32) {
    %c0_i32 = arith.constant 0 : i32
    %c0_i32_0 = arith.constant 0 : i32
    %c0_i32_1 = arith.constant 0 : i32
    return %c0_i32, %c0_i32_0 : i32, i32
  }
  func.func @transform_2(%arg0: i32) -> (i32, i32) {
    %c0_i32 = arith.constant 0 : i32
    %c0_i32_0 = arith.constant 0 : i32
    %c0_i32_1 = arith.constant 0 : i32
    return %c0_i32, %c0_i32_0 : i32, i32
  }
  func.func @transform_3(%arg0: i32) -> (i32, i32) {
    %c0_i32 = arith.constant 0 : i32
    %c0_i32_0 = arith.constant 0 : i32
    return %arg0, %c0_i32 : i32, i32
  }
}

module attributes {stable_mosaic.version = 11 : i64} {
  func.func @_se_kernel(%arg0: i32, %arg1: memref<8x128xf32, #tpu.memory_space<vmem>>, %arg2: memref<128x128xbf16, #tpu.memory_space<vmem>>, %arg3: memref<128x128xbf16, #tpu.memory_space<vmem>>, %arg4: memref<8x128xf32, #tpu.memory_space<vmem>>) attributes {dimension_semantics = [#tpu.dimension_semantics<parallel>], iteration_bounds = array<i64: 1>, scalar_prefetch = 0 : i64, scratch_operands = 0 : i64, tpu.core_type = #tpu.core_type<tc>, window_params = [{transform_indices = @transform_0, window_bounds = array<i64: 8, 128>}, {pipeline_mode = #tpu.pipeline_mode<synchronous>, transform_indices = @transform_1, window_bounds = array<i64: 128, 128>}, {pipeline_mode = #tpu.pipeline_mode<synchronous>, transform_indices = @transform_2, window_bounds = array<i64: 128, 128>}, {transform_indices = @transform_3, window_bounds = array<i64: 8, 128>}]} {
    %c0 = arith.constant 0 : index
    %c0_0 = arith.constant 0 : index
    %0 = vector.load %arg1[%c0, %c0_0] : memref<8x128xf32, #tpu.memory_space<vmem>>, vector<8x128xf32>
    %1 = arith.truncf %0 : vector<8x128xf32> to vector<8x128xbf16>
    %c0_1 = arith.constant 0 : index
    %c0_2 = arith.constant 0 : index
    %2 = vector.load %arg2[%c0_1, %c0_2] : memref<128x128xbf16, #tpu.memory_space<vmem>>, vector<128x128xbf16>
    %cst = arith.constant dense<0.000000e+00> : vector<8x128xf32>
    %3 = tpu.matmul %1, %2, %cst {dimension_numbers = #tpu.dot_dimension_numbers<[1], [0], [0], [1], [0, 0, 1, 1], [], []>} : vector<8x128xbf16>, vector<128x128xbf16>, vector<8x128xf32> -> vector<8x128xf32>
    %cst_3 = arith.constant 0.000000e+00 : f32
    %4 = vector.broadcast %cst_3 : f32 to vector<8x128xf32>
    %5 = arith.maximumf %3, %4 : vector<8x128xf32>
    %6 = arith.truncf %5 : vector<8x128xf32> to vector<8x128xbf16>
    %c0_4 = arith.constant 0 : index
    %c0_5 = arith.constant 0 : index
    %7 = vector.load %arg3[%c0_4, %c0_5] : memref<128x128xbf16, #tpu.memory_space<vmem>>, vector<128x128xbf16>
    %cst_6 = arith.constant dense<0.000000e+00> : vector<8x128xf32>
    %8 = tpu.matmul %6, %7, %cst_6 {dimension_numbers = #tpu.dot_dimension_numbers<[1], [0], [0], [1], [0, 0, 1, 1], [], []>} : vector<8x128xbf16>, vector<128x128xbf16>, vector<8x128xf32> -> vector<8x128xf32>
    %9 = arith.negf %8 : vector<8x128xf32>
    %10 = math.exp %9 : vector<8x128xf32>
    %cst_7 = arith.constant 1.000000e+00 : f32
    %11 = vector.broadcast %cst_7 : f32 to vector<8x128xf32>
    %12 = arith.addf %11, %10 : vector<8x128xf32>
    %13 = arith.divf %11, %12 : vector<8x128xf32>
    %14 = arith.mulf %0, %13 : vector<8x128xf32>
    %c0_8 = arith.constant 0 : index
    %c0_9 = arith.constant 0 : index
    %15 = vector.load %arg4[%c0_8, %c0_9] : memref<8x128xf32, #tpu.memory_space<vmem>>, vector<8x128xf32>
    tpu.vector_store %arg4[%c0_8, %c0_9], %14 {strides = array<i32>} : memref<8x128xf32, #tpu.memory_space<vmem>>, vector<8x128xf32>,
    return
  }
  func.func @transform_0(%arg0: i32) -> (i32, i32) {
    %c0_i32 = arith.constant 0 : i32
    %c0_i32_0 = arith.constant 0 : i32
    return %arg0, %c0_i32 : i32, i32
  }
  func.func @transform_1(%arg0: i32) -> (i32, i32) {
    %c0_i32 = arith.constant 0 : i32
    %c0_i32_0 = arith.constant 0 : i32
    %c0_i32_1 = arith.constant 0 : i32
    return %c0_i32, %c0_i32_0 : i32, i32
  }
  func.func @transform_2(%arg0: i32) -> (i32, i32) {
    %c0_i32 = arith.constant 0 : i32
    %c0_i32_0 = arith.constant 0 : i32
    %c0_i32_1 = arith.constant 0 : i32
    return %c0_i32, %c0_i32_0 : i32, i32
  }
  func.func @transform_3(%arg0: i32) -> (i32, i32) {
    %c0_i32 = arith.constant 0 : i32
    %c0_i32_0 = arith.constant 0 : i32
    return %arg0, %c0_i32 : i32, i32
  }
}

</mosaic_0001>

<llo_original>
// kernel: tpu_custom_call.1
$region0: #{tpu_custom_call.1}
  #allocation0 [shape = 'u32[]', space=smem, size = 0x4, offset = 0x4, fixed_abs, tag = 'smem constant byte address 0x4 - core index']
  #allocation1 [shape = 'u32[144,128]{1,0:T(1,128)}', space=vmem, size = 0x12000, scoped, tag = 'internal scratch']
  %s0 = inlined_call_operand.hbm [shape: f32[8,128], index: 0, kind: input, shape index: {}]
  %s1 = inlined_call_operand.hbm [shape: bf16[128,128], index: 1, kind: input, shape index: {}]
  %s2 = inlined_call_operand.hbm [shape: bf16[128,128], index: 2, kind: input, shape index: {}]
  %s3 = inlined_call_operand.hbm [shape: f32[8,128], index: 3, kind: output, shape index: {}]
  %s4 = sld [smem:[#allocation0]]
  $region34: #{tpu_custom_call.1} parent=0
    _
  %s6 = ssub.s32 1, %s4
  %s7 = scalar_select 0, %s6, %s4
  $region1: #{tpu_custom_call.1} parent=0
    #allocation2 [shape = 'u8[4096]{0}', space=vmem, size = 0x1000, scoped, tag = 'input window, operand 0, single buffered']
    #allocation3 [shape = 's32[1]{0}', space=sflag, size = 0x4, scoped, tag = 'scoped memory for tpu_custom_call.1']
    #allocation4 [shape = 's32[1]{0}', space=sflag, size = 0x4, scoped, tag = 'scoped memory for tpu_custom_call.1']
    #allocation5 [shape = 'u8[32768]{0}', space=vmem, size = 0x8000, scoped, tag = 'input window, operand 1, single buffered']
    #allocation6 [shape = 's32[1]{0}', space=sflag, size = 0x4, scoped, tag = 'scoped memory for tpu_custom_call.1']
    #allocation7 [shape = 'u8[32768]{0}', space=vmem, size = 0x8000, scoped, tag = 'input window, operand 2, single buffered']
    #allocation8 [shape = 'u8[4096]{0}', space=vmem, size = 0x1000, scoped, tag = 'output window, operand 0, single buffered']
    %8 = vsyncpa [#allocation3], 0
    %9 = vsyncpa [#allocation6], 0
    %10 = vsyncpa [#allocation4], 0
    // Predicated region
    $region2: #{tpu_custom_call.1} parent=1 // pred_check
      _
    $region3: #{tpu_custom_call.1} parent=1 // pred_check_branch
      %12 = sbr.rel (0) target = $region5
    $region4: #{tpu_custom_call.1} parent=1 // pred_region
      %s14 = ssub.s32 128, 128
      %15 = vsyncadd [#allocation3], %s14
      %s17 = sshll.u32 [#allocation2], 4
      %s18 = int_to_ptr.vmem [resolvable:$true] %s17
      %20 = dma.hbm_to_vmem [thread:$0]  %s0, 128, %s18, [#allocation3]
    $region5: #{tpu_custom_call.1} parent=1 // pred_fallthru
      _
    // Predicated region
    $region6: #{tpu_custom_call.1} parent=1 // pred_check
      _
    $region7: #{tpu_custom_call.1} parent=1 // pred_check_branch
      %22 = sbr.rel (0) target = $region9
    $region8: #{tpu_custom_call.1} parent=1 // pred_region
      %s24 = ssub.s32 1024, 1024
      %25 = vsyncadd [#allocation6], %s24
      %s26 = sshll.u32 [#allocation5], 4
      %s27 = int_to_ptr.vmem [resolvable:$true] %s26
      %32 = dma.hbm_to_vmem [thread:$0]  %s1, 1024, %s27, [#allocation6], 64, 64, 4
    $region9: #{tpu_custom_call.1} parent=1 // pred_fallthru
      _
    // Predicated region
    $region10: #{tpu_custom_call.1} parent=1 // pred_check
      _
    $region11: #{tpu_custom_call.1} parent=1 // pred_check_branch
      %34 = sbr.rel (0) target = $region13
    $region12: #{tpu_custom_call.1} parent=1 // pred_region
      %s36 = ssub.s32 1024, 1024
      %37 = vsyncadd [#allocation6], %s36
      %s38 = sshll.u32 [#allocation7], 4
      %s39 = int_to_ptr.vmem [resolvable:$true] %s38
      %44 = dma.hbm_to_vmem [thread:$0]  %s2, 1024, %s39, [#allocation6], 64, 64, 4
    $region13: #{tpu_custom_call.1} parent=1 // pred_fallthru
      _
    // Predicated region
    $region14: #{tpu_custom_call.1} parent=1 // pred_check
      _
    $region15: #{tpu_custom_call.1} parent=1 // pred_check_branch
      %46 = sbr.rel (0) target = $region17
    $region16: #{tpu_custom_call.1} parent=1 // pred_region
      %47 = dma.done [#allocation3], 128
    $region17: #{tpu_custom_call.1} parent=1 // pred_fallthru
      _
    // Predicated region
    $region18: #{tpu_custom_call.1} parent=1 // pred_check
      _
    $region19: #{tpu_custom_call.1} parent=1 // pred_check_branch
      %49 = sbr.rel (0) target = $region21
    $region20: #{tpu_custom_call.1} parent=1 // pred_region
      %50 = dma.done [#allocation6], 1024
    $region21: #{tpu_custom_call.1} parent=1 // pred_fallthru
      _
    // Predicated region
    $region22: #{tpu_custom_call.1} parent=1 // pred_check
      _
    $region23: #{tpu_custom_call.1} parent=1 // pred_check_branch
      %52 = sbr.rel (0) target = $region25
    $region24: #{tpu_custom_call.1} parent=1 // pred_region
      %53 = dma.done [#allocation6], 1024
    $region25: #{tpu_custom_call.1} parent=1 // pred_fallthru
      _
    %v55 = vld [vmem:[#allocation2] sm:$0xff]
    %v56 = vpack.c.bf16 %v55, %v55
    %v57 = vld [vmem:[#allocation5] sm:$0xf]
    %v58 = vld [vmem:[#allocation5 + $0x4] sm:$0xf]
    %v59 = vld [vmem:[#allocation5 + $0x8] sm:$0xf]
    %v60 = vld [vmem:[#allocation5 + $0xc] sm:$0xf]
    %v61 = vld [vmem:[#allocation5 + $0x10] sm:$0xf]
    %v62 = vld [vmem:[#allocation5 + $0x14] sm:$0xf]
    %v63 = vld [vmem:[#allocation5 + $0x18] sm:$0xf]
    %v64 = vld [vmem:[#allocation5 + $0x1c] sm:$0xf]
    %v65 = vld [vmem:[#allocation5 + $0x20] sm:$0xf]
    %v66 = vld [vmem:[#allocation5 + $0x24] sm:$0xf]
    %v67 = vld [vmem:[#allocation5 + $0x28] sm:$0xf]
    %v68 = vld [vmem:[#allocation5 + $0x2c] sm:$0xf]
    %v69 = vld [vmem:[#allocation5 + $0x30] sm:$0xf]
    %v70 = vld [vmem:[#allocation5 + $0x34] sm:$0xf]
    %v71 = vld [vmem:[#allocation5 + $0x38] sm:$0xf]
    %v72 = vld [vmem:[#allocation5 + $0x3c] sm:$0xf]
    %v89 = vunpack.c.l.b16 %v57
    %v90 = vunpack.c.l.b16 %v58
    %v91 = vunpack.c.l.b16 %v59
    %v92 = vunpack.c.l.b16 %v60
    %v93 = vunpack.c.l.b16 %v61
    %v94 = vunpack.c.l.b16 %v62
    %v95 = vunpack.c.l.b16 %v63
    %v96 = vunpack.c.l.b16 %v64
    %v97 = vunpack.c.l.b16 %v65
    %v98 = vunpack.c.l.b16 %v66
    %v99 = vunpack.c.l.b16 %v67
    %v100 = vunpack.c.l.b16 %v68
    %v101 = vunpack.c.l.b16 %v69
    %v102 = vunpack.c.l.b16 %v70
    %v103 = vunpack.c.l.b16 %v71
    %v104 = vunpack.c.l.b16 %v72
    %v105 = vpack.c.b16 %v90, %v89
    %v106 = vpack.c.b16 %v92, %v91
    %v107 = vpack.c.b16 %v94, %v93
    %v108 = vpack.c.b16 %v96, %v95
    %v109 = vpack.c.b16 %v98, %v97
    %v110 = vpack.c.b16 %v100, %v99
    %v111 = vpack.c.b16 %v102, %v101
    %v112 = vpack.c.b16 %v104, %v103
    %121 = vmatprep.subr.bf16.mxu0 0
    %122 = vmatpush1.bf16.msra.mxu0 %v112
    %123 = vmatprep.subr.bf16.mxu0 0
    %124 = vmatpush1.bf16.msra.mxu0 %v111
    %125 = vmatprep.subr.bf16.mxu0 0
    %126 = vmatpush1.bf16.msra.mxu0 %v110
    %127 = vmatprep.subr.bf16.mxu0 0
    %128 = vmatpush1.bf16.msra.mxu0 %v109
    %129 = vmatprep.subr.bf16.mxu0 0
    %130 = vmatpush1.bf16.msra.mxu0 %v108
    %131 = vmatprep.subr.bf16.mxu0 0
    %132 = vmatpush1.bf16.msra.mxu0 %v107
    %133 = vmatprep.subr.bf16.mxu0 0
    %134 = vmatpush1.bf16.msra.mxu0 %v106
    %135 = vmatprep.subr.bf16.mxu0 0
    %136 = vmatpush1.bf16.msra.mxu0 %v105
    %137 = vmatprep.subr.bf16.mxu0 0
    %138 = vmatpush2.bf16.msra.mxu0 0
    %139 = vmatprep.subr.bf16.mxu0 0
    %140 = vmatpush2.bf16.msra.mxu0 0
    %141 = vmatprep.subr.bf16.mxu0 0
    %142 = vmatpush2.bf16.msra.mxu0 0
    %143 = vmatprep.subr.bf16.mxu0 0
    %144 = vmatpush2.bf16.msra.mxu0 0
    %145 = vmatprep.subr.bf16.mxu0 0
    %146 = vmatpush2.bf16.msra.mxu0 0
    %147 = vmatprep.subr.bf16.mxu0 0
    %148 = vmatpush2.bf16.msra.mxu0 0
    %149 = vmatprep.subr.bf16.mxu0 0
    %150 = vmatpush2.bf16.msra.mxu0 0
    %151 = vmatprep.subr.bf16.mxu0 0
    %152 = vmatpush2.bf16.msra.mxu0 0
    %153 = vmatprep.mubr.bf16.mxu0 0
    %154 = vmatmul.mubr.bf16.gmra.mxu0 %v56
    %v155 = vpop.f32.mrf.mxu0
    %v156 = vadd.f32 0.0, %v155
    %v157 = vpop.f32.mrf.mxu0
    %v158 = vpop.f32.mrf.mxu0
    %v159 = vpop.f32.mrf.mxu0
    %160 = vdwg.mxu0
    %v161 = vmax.f32 %v156, 0.0
    %v162 = vpack.c.bf16 %v161, %v161
    %v163 = vld [vmem:[#allocation7] sm:$0xf]
    %v164 = vld [vmem:[#allocation7 + $0x4] sm:$0xf]
    %v165 = vld [vmem:[#allocation7 + $0x8] sm:$0xf]
    %v166 = vld [vmem:[#allocation7 + $0xc] sm:$0xf]
    %v167 = vld [vmem:[#allocation7 + $0x10] sm:$0xf]
    %v168 = vld [vmem:[#allocation7 + $0x14] sm:$0xf]
    %v169 = vld [vmem:[#allocation7 + $0x18] sm:$0xf]
    %v170 = vld [vmem:[#allocation7 + $0x1c] sm:$0xf]
    %v171 = vld [vmem:[#allocation7 + $0x20] sm:$0xf]
    %v172 = vld [vmem:[#allocation7 + $0x24] sm:$0xf]
    %v173 = vld [vmem:[#allocation7 + $0x28] sm:$0xf]
    %v174 = vld [vmem:[#allocation7 + $0x2c] sm:$0xf]
    %v175 = vld [vmem:[#allocation7 + $0x30] sm:$0xf]
    %v176 = vld [vmem:[#allocation7 + $0x34] sm:$0xf]
    %v177 = vld [vmem:[#allocation7 + $0x38] sm:$0xf]
    %v178 = vld [vmem:[#allocation7 + $0x3c] sm:$0xf]
    %v195 = vunpack.c.l.b16 %v163
    %v196 = vunpack.c.l.b16 %v164
    %v197 = vunpack.c.l.b16 %v165
    %v198 = vunpack.c.l.b16 %v166
    %v199 = vunpack.c.l.b16 %v167
    %v200 = vunpack.c.l.b16 %v168
    %v201 = vunpack.c.l.b16 %v169
    %v202 = vunpack.c.l.b16 %v170
    %v203 = vunpack.c.l.b16 %v171
    %v204 = vunpack.c.l.b16 %v172
    %v205 = vunpack.c.l.b16 %v173
    %v206 = vunpack.c.l.b16 %v174
    %v207 = vunpack.c.l.b16 %v175
    %v208 = vunpack.c.l.b16 %v176
    %v209 = vunpack.c.l.b16 %v177
    %v210 = vunpack.c.l.b16 %v178
    %v211 = vpack.c.b16 %v196, %v195
    %v212 = vpack.c.b16 %v198, %v197
    %v213 = vpack.c.b16 %v200, %v199
    %v214 = vpack.c.b16 %v202, %v201
    %v215 = vpack.c.b16 %v204, %v203
    %v216 = vpack.c.b16 %v206, %v205
    %v217 = vpack.c.b16 %v208, %v207
    %v218 = vpack.c.b16 %v210, %v209
    %227 = vmatprep.subr.bf16.mxu0 0
    %228 = vmatpush1.bf16.msra.mxu0 %v218
    %229 = vmatprep.subr.bf16.mxu0 0
    %230 = vmatpush1.bf16.msra.mxu0 %v217
    %231 = vmatprep.subr.bf16.mxu0 0
    %232 = vmatpush1.bf16.msra.mxu0 %v216
    %233 = vmatprep.subr.bf16.mxu0 0
    %234 = vmatpush1.bf16.msra.mxu0 %v215
    %235 = vmatprep.subr.bf16.mxu0 0
    %236 = vmatpush1.bf16.msra.mxu0 %v214
    %237 = vmatprep.subr.bf16.mxu0 0
    %238 = vmatpush1.bf16.msra.mxu0 %v213
    %239 = vmatprep.subr.bf16.mxu0 0
    %240 = vmatpush1.bf16.msra.mxu0 %v212
    %241 = vmatprep.subr.bf16.mxu0 0
    %242 = vmatpush1.bf16.msra.mxu0 %v211
    %243 = vmatprep.subr.bf16.mxu0 0
    %244 = vmatpush2.bf16.msra.mxu0 0
    %245 = vmatprep.subr.bf16.mxu0 0
    %246 = vmatpush2.bf16.msra.mxu0 0
    %247 = vmatprep.subr.bf16.mxu0 0
    %248 = vmatpush2.bf16.msra.mxu0 0
    %249 = vmatprep.subr.bf16.mxu0 0
    %250 = vmatpush2.bf16.msra.mxu0 0
    %251 = vmatprep.subr.bf16.mxu0 0
    %252 = vmatpush2.bf16.msra.mxu0 0
    %253 = vmatprep.subr.bf16.mxu0 0
    %254 = vmatpush2.bf16.msra.mxu0 0
    %255 = vmatprep.subr.bf16.mxu0 0
    %256 = vmatpush2.bf16.msra.mxu0 0
    %257 = vmatprep.subr.bf16.mxu0 0
    %258 = vmatpush2.bf16.msra.mxu0 0
    %259 = vmatprep.mubr.bf16.mxu0 0
    %260 = vmatmul.mubr.bf16.gmra.mxu0 %v162
    %v261 = vpop.f32.mrf.mxu0
    %v262 = vadd.f32 0.0, %v261
    %v263 = vpop.f32.mrf.mxu0
    %v264 = vpop.f32.mrf.mxu0
    %v265 = vpop.f32.mrf.mxu0
    %266 = vdwg.mxu0
    %v267 = vxor.u32 %v262, 2147483648
    %v268 = vmul.f32 %v267, 1.442695
    %v269 = vpow.pop %v268
    %v270 = vadd.f32 %v269, 1.0
    %v271 = vrcp.pop %v270
    %v272 = vmul.f32 1.0, %v271
    %v273 = vmul.f32 %v55, %v272
    %274 = vst [vmem:[#allocation8] sm:$0xff] %v273
    // Predicated region
    $region26: #{tpu_custom_call.1} parent=1 // pred_check
      _
    $region27: #{tpu_custom_call.1} parent=1 // pred_check_branch
      %276 = sbr.rel (0) target = $region29
    $region28: #{tpu_custom_call.1} parent=1 // pred_region
      %s278 = ssub.s32 128, 128
      %279 = vsyncadd [#allocation4], %s278
      %s281 = sshll.u32 [#allocation8], 4
      %s282 = int_to_ptr.vmem [resolvable:$true] %s281
      %284 = dma.vmem_to_hbm [thread:$0]  %s282, 128, %s3, [#allocation4]
    $region29: #{tpu_custom_call.1} parent=1 // pred_fallthru
      _
    // Predicated region
    $region30: #{tpu_custom_call.1} parent=1 // pred_check
      _
    $region31: #{tpu_custom_call.1} parent=1 // pred_check_branch
      %286 = sbr.rel (0) target = $region33
    $region32: #{tpu_custom_call.1} parent=1 // pred_region
      %287 = dma.done [#allocation4], 128
    $region33: #{tpu_custom_call.1} parent=1 // pred_fallthru
      _
    %288 = vsyncpa [#allocation3], 1
    %289 = vsyncpa [#allocation6], 1
    %290 = vsyncpa [#allocation4], 1

// kernel: tpu_custom_call.1
$region0: #{tpu_custom_call.1}
  #allocation0 [shape = 'u32[]', space=smem, size = 0x4, offset = 0x4, fixed_abs, tag = 'smem constant byte address 0x4 - core index']
  #allocation1 [shape = 'u32[144,128]{1,0:T(1,128)}', space=vmem, size = 0x12000, scoped, tag = 'internal scratch']
  %s0 = inlined_call_operand.hbm [shape: f32[8,128], index: 0, kind: input, shape index: {}]
  %s1 = inlined_call_operand.hbm [shape: bf16[128,128], index: 1, kind: input, shape index: {}]
  %s2 = inlined_call_operand.hbm [shape: bf16[128,128], index: 2, kind: input, shape index: {}]
  %s3 = inlined_call_operand.hbm [shape: f32[8,128], index: 3, kind: output, shape index: {}]
  %s4 = sld [smem:[#allocation0]]
  $region34: #{tpu_custom_call.1} parent=0
    _
  %s6 = ssub.s32 1, %s4
  %s7 = scalar_select 0, %s6, %s4
  $region1: #{tpu_custom_call.1} parent=0
    #allocation2 [shape = 'u8[4096]{0}', space=vmem, size = 0x1000, scoped, tag = 'input window, operand 0, single buffered']
    #allocation3 [shape = 's32[1]{0}', space=sflag, size = 0x4, scoped, tag = 'scoped memory for tpu_custom_call.1']
    #allocation4 [shape = 's32[1]{0}', space=sflag, size = 0x4, scoped, tag = 'scoped memory for tpu_custom_call.1']
    #allocation5 [shape = 'u8[32768]{0}', space=vmem, size = 0x8000, scoped, tag = 'input window, operand 1, single buffered']
    #allocation6 [shape = 's32[1]{0}', space=sflag, size = 0x4, scoped, tag = 'scoped memory for tpu_custom_call.1']
    #allocation7 [shape = 'u8[32768]{0}', space=vmem, size = 0x8000, scoped, tag = 'input window, operand 2, single buffered']
    #allocation8 [shape = 'u8[4096]{0}', space=vmem, size = 0x1000, scoped, tag = 'output window, operand 0, single buffered']
    %8 = vsyncpa [#allocation3], 0
    %9 = vsyncpa [#allocation6], 0
    %10 = vsyncpa [#allocation4], 0
    // Predicated region
    $region2: #{tpu_custom_call.1} parent=1 // pred_check
      _
    $region3: #{tpu_custom_call.1} parent=1 // pred_check_branch
      %12 = sbr.rel (0) target = $region5
    $region4: #{tpu_custom_call.1} parent=1 // pred_region
      %s14 = ssub.s32 128, 128
      %15 = vsyncadd [#allocation3], %s14
      %s17 = sshll.u32 [#allocation2], 4
      %s18 = int_to_ptr.vmem [resolvable:$true] %s17
      %20 = dma.hbm_to_vmem [thread:$0]  %s0, 128, %s18, [#allocation3]
    $region5: #{tpu_custom_call.1} parent=1 // pred_fallthru
      _
    // Predicated region
    $region6: #{tpu_custom_call.1} parent=1 // pred_check
      _
    $region7: #{tpu_custom_call.1} parent=1 // pred_check_branch
      %22 = sbr.rel (0) target = $region9
    $region8: #{tpu_custom_call.1} parent=1 // pred_region
      %s24 = ssub.s32 1024, 1024
      %25 = vsyncadd [#allocation6], %s24
      %s26 = sshll.u32 [#allocation5], 4
      %s27 = int_to_ptr.vmem [resolvable:$true] %s26
      %32 = dma.hbm_to_vmem [thread:$0]  %s1, 1024, %s27, [#allocation6], 64, 64, 4
    $region9: #{tpu_custom_call.1} parent=1 // pred_fallthru
      _
    // Predicated region
    $region10: #{tpu_custom_call.1} parent=1 // pred_check
      _
    $region11: #{tpu_custom_call.1} parent=1 // pred_check_branch
      %34 = sbr.rel (0) target = $region13
    $region12: #{tpu_custom_call.1} parent=1 // pred_region
      %s36 = ssub.s32 1024, 1024
      %37 = vsyncadd [#allocation6], %s36
      %s38 = sshll.u32 [#allocation7], 4
      %s39 = int_to_ptr.vmem [resolvable:$true] %s38
      %44 = dma.hbm_to_vmem [thread:$0]  %s2, 1024, %s39, [#allocation6], 64, 64, 4
    $region13: #{tpu_custom_call.1} parent=1 // pred_fallthru
      _
    // Predicated region
    $region14: #{tpu_custom_call.1} parent=1 // pred_check
      _
    $region15: #{tpu_custom_call.1} parent=1 // pred_check_branch
      %46 = sbr.rel (0) target = $region17
    $region16: #{tpu_custom_call.1} parent=1 // pred_region
      %47 = dma.done [#allocation3], 128
    $region17: #{tpu_custom_call.1} parent=1 // pred_fallthru
      _
    // Predicated region
    $region18: #{tpu_custom_call.1} parent=1 // pred_check
      _
    $region19: #{tpu_custom_call.1} parent=1 // pred_check_branch
      %49 = sbr.rel (0) target = $region21
    $region20: #{tpu_custom_call.1} parent=1 // pred_region
      %50 = dma.done [#allocation6], 1024
    $region21: #{tpu_custom_call.1} parent=1 // pred_fallthru
      _
    // Predicated region
    $region22: #{tpu_custom_call.1} parent=1 // pred_check
      _
    $region23: #{tpu_custom_call.1} parent=1 // pred_check_branch
      %52 = sbr.rel (0) target = $region25
    $region24: #{tpu_custom_call.1} parent=1 // pred_region
      %53 = dma.done [#allocation6], 1024
    $region25: #{tpu_custom_call.1} parent=1 // pred_fallthru
      _
    %v55 = vld [vmem:[#allocation2] sm:$0xff]
    %v56 = vpack.c.bf16 %v55, %v55
    %v57 = vld [vmem:[#allocation5] sm:$0xf]
    %v58 = vld [vmem:[#allocation5 + $0x4] sm:$0xf]
    %v59 = vld [vmem:[#allocation5 + $0x8] sm:$0xf]
    %v60 = vld [vmem:[#allocation5 + $0xc] sm:$0xf]
    %v61 = vld [vmem:[#allocation5 + $0x10] sm:$0xf]
    %v62 = vld [vmem:[#allocation5 + $0x14] sm:$0xf]
    %v63 = vld [vmem:[#allocation5 + $0x18] sm:$0xf]
    %v64 = vld [vmem:[#allocation5 + $0x1c] sm:$0xf]
    %v65 = vld [vmem:[#allocation5 + $0x20] sm:$0xf]
    %v66 = vld [vmem:[#allocation5 + $0x24] sm:$0xf]
    %v67 = vld [vmem:[#allocation5 + $0x28] sm:$0xf]
    %v68 = vld [vmem:[#allocation5 + $0x2c] sm:$0xf]
    %v69 = vld [vmem:[#allocation5 + $0x30] sm:$0xf]
    %v70 = vld [vmem:[#allocation5 + $0x34] sm:$0xf]
    %v71 = vld [vmem:[#allocation5 + $0x38] sm:$0xf]
    %v72 = vld [vmem:[#allocation5 + $0x3c] sm:$0xf]
    %v89 = vunpack.c.l.b16 %v57
    %v90 = vunpack.c.l.b16 %v58
    %v91 = vunpack.c.l.b16 %v59
    %v92 = vunpack.c.l.b16 %v60
    %v93 = vunpack.c.l.b16 %v61
    %v94 = vunpack.c.l.b16 %v62
    %v95 = vunpack.c.l.b16 %v63
    %v96 = vunpack.c.l.b16 %v64
    %v97 = vunpack.c.l.b16 %v65
    %v98 = vunpack.c.l.b16 %v66
    %v99 = vunpack.c.l.b16 %v67
    %v100 = vunpack.c.l.b16 %v68
    %v101 = vunpack.c.l.b16 %v69
    %v102 = vunpack.c.l.b16 %v70
    %v103 = vunpack.c.l.b16 %v71
    %v104 = vunpack.c.l.b16 %v72
    %v105 = vpack.c.b16 %v90, %v89
    %v106 = vpack.c.b16 %v92, %v91
    %v107 = vpack.c.b16 %v94, %v93
    %v108 = vpack.c.b16 %v96, %v95
    %v109 = vpack.c.b16 %v98, %v97
    %v110 = vpack.c.b16 %v100, %v99
    %v111 = vpack.c.b16 %v102, %v101
    %v112 = vpack.c.b16 %v104, %v103
    %121 = vmatprep.subr.bf16.mxu0 0
    %122 = vmatpush1.bf16.msra.mxu0 %v112
    %123 = vmatprep.subr.bf16.mxu0 0
    %124 = vmatpush1.bf16.msra.mxu0 %v111
    %125 = vmatprep.subr.bf16.mxu0 0
    %126 = vmatpush1.bf16.msra.mxu0 %v110
    %127 = vmatprep.subr.bf16.mxu0 0
    %128 = vmatpush1.bf16.msra.mxu0 %v109
    %129 = vmatprep.subr.bf16.mxu0 0
    %130 = vmatpush1.bf16.msra.mxu0 %v108
    %131 = vmatprep.subr.bf16.mxu0 0
    %132 = vmatpush1.bf16.msra.mxu0 %v107
    %133 = vmatprep.subr.bf16.mxu0 0
    %134 = vmatpush1.bf16.msra.mxu0 %v106
    %135 = vmatprep.subr.bf16.mxu0 0
    %136 = vmatpush1.bf16.msra.mxu0 %v105
    %137 = vmatprep.subr.bf16.mxu0 0
    %138 = vmatpush2.bf16.msra.mxu0 0
    %139 = vmatprep.subr.bf16.mxu0 0
    %140 = vmatpush2.bf16.msra.mxu0 0
    %141 = vmatprep.subr.bf16.mxu0 0
    %142 = vmatpush2.bf16.msra.mxu0 0
    %143 = vmatprep.subr.bf16.mxu0 0
    %144 = vmatpush2.bf16.msra.mxu0 0
    %145 = vmatprep.subr.bf16.mxu0 0
    %146 = vmatpush2.bf16.msra.mxu0 0
    %147 = vmatprep.subr.bf16.mxu0 0
    %148 = vmatpush2.bf16.msra.mxu0 0
    %149 = vmatprep.subr.bf16.mxu0 0
    %150 = vmatpush2.bf16.msra.mxu0 0
    %151 = vmatprep.subr.bf16.mxu0 0
    %152 = vmatpush2.bf16.msra.mxu0 0
    %153 = vmatprep.mubr.bf16.mxu0 0
    %154 = vmatmul.mubr.bf16.gmra.mxu0 %v56
    %v155 = vpop.f32.mrf.mxu0
    %v156 = vadd.f32 0.0, %v155
    %v157 = vpop.f32.mrf.mxu0
    %v158 = vpop.f32.mrf.mxu0
    %v159 = vpop.f32.mrf.mxu0
    %160 = vdwg.mxu0
    %v161 = vmax.f32 %v156, 0.0
    %v162 = vpack.c.bf16 %v161, %v161
    %v163 = vld [vmem:[#allocation7] sm:$0xf]
    %v164 = vld [vmem:[#allocation7 + $0x4] sm:$0xf]
    %v165 = vld [vmem:[#allocation7 + $0x8] sm:$0xf]
    %v166 = vld [vmem:[#allocation7 + $0xc] sm:$0xf]
    %v167 = vld [vmem:[#allocation7 + $0x10] sm:$0xf]
    %v168 = vld [vmem:[#allocation7 + $0x14] sm:$0xf]
    %v169 = vld [vmem:[#allocation7 + $0x18] sm:$0xf]
    %v170 = vld [vmem:[#allocation7 + $0x1c] sm:$0xf]
    %v171 = vld [vmem:[#allocation7 + $0x20] sm:$0xf]
    %v172 = vld [vmem:[#allocation7 + $0x24] sm:$0xf]
    %v173 = vld [vmem:[#allocation7 + $0x28] sm:$0xf]
    %v174 = vld [vmem:[#allocation7 + $0x2c] sm:$0xf]
    %v175 = vld [vmem:[#allocation7 + $0x30] sm:$0xf]
    %v176 = vld [vmem:[#allocation7 + $0x34] sm:$0xf]
    %v177 = vld [vmem:[#allocation7 + $0x38] sm:$0xf]
    %v178 = vld [vmem:[#allocation7 + $0x3c] sm:$0xf]
    %v195 = vunpack.c.l.b16 %v163
    %v196 = vunpack.c.l.b16 %v164
    %v197 = vunpack.c.l.b16 %v165
    %v198 = vunpack.c.l.b16 %v166
    %v199 = vunpack.c.l.b16 %v167
    %v200 = vunpack.c.l.b16 %v168
    %v201 = vunpack.c.l.b16 %v169
    %v202 = vunpack.c.l.b16 %v170
    %v203 = vunpack.c.l.b16 %v171
    %v204 = vunpack.c.l.b16 %v172
    %v205 = vunpack.c.l.b16 %v173
    %v206 = vunpack.c.l.b16 %v174
    %v207 = vunpack.c.l.b16 %v175
    %v208 = vunpack.c.l.b16 %v176
    %v209 = vunpack.c.l.b16 %v177
    %v210 = vunpack.c.l.b16 %v178
    %v211 = vpack.c.b16 %v196, %v195
    %v212 = vpack.c.b16 %v198, %v197
    %v213 = vpack.c.b16 %v200, %v199
    %v214 = vpack.c.b16 %v202, %v201
    %v215 = vpack.c.b16 %v204, %v203
    %v216 = vpack.c.b16 %v206, %v205
    %v217 = vpack.c.b16 %v208, %v207
    %v218 = vpack.c.b16 %v210, %v209
    %227 = vmatprep.subr.bf16.mxu0 0
    %228 = vmatpush1.bf16.msra.mxu0 %v218
    %229 = vmatprep.subr.bf16.mxu0 0
    %230 = vmatpush1.bf16.msra.mxu0 %v217
    %231 = vmatprep.subr.bf16.mxu0 0
    %232 = vmatpush1.bf16.msra.mxu0 %v216
    %233 = vmatprep.subr.bf16.mxu0 0
    %234 = vmatpush1.bf16.msra.mxu0 %v215
    %235 = vmatprep.subr.bf16.mxu0 0
    %236 = vmatpush1.bf16.msra.mxu0 %v214
    %237 = vmatprep.subr.bf16.mxu0 0
    %238 = vmatpush1.bf16.msra.mxu0 %v213
    %239 = vmatprep.subr.bf16.mxu0 0
    %240 = vmatpush1.bf16.msra.mxu0 %v212
    %241 = vmatprep.subr.bf16.mxu0 0
    %242 = vmatpush1.bf16.msra.mxu0 %v211
    %243 = vmatprep.subr.bf16.mxu0 0
    %244 = vmatpush2.bf16.msra.mxu0 0
    %245 = vmatprep.subr.bf16.mxu0 0
    %246 = vmatpush2.bf16.msra.mxu0 0
    %247 = vmatprep.subr.bf16.mxu0 0
    %248 = vmatpush2.bf16.msra.mxu0 0
    %249 = vmatprep.subr.bf16.mxu0 0
    %250 = vmatpush2.bf16.msra.mxu0 0
    %251 = vmatprep.subr.bf16.mxu0 0
    %252 = vmatpush2.bf16.msra.mxu0 0
    %253 = vmatprep.subr.bf16.mxu0 0
    %254 = vmatpush2.bf16.msra.mxu0 0
    %255 = vmatprep.subr.bf16.mxu0 0
    %256 = vmatpush2.bf16.msra.mxu0 0
    %257 = vmatprep.subr.bf16.mxu0 0
    %258 = vmatpush2.bf16.msra.mxu0 0
    %259 = vmatprep.mubr.bf16.mxu0 0
    %260 = vmatmul.mubr.bf16.gmra.mxu0 %v162
    %v261 = vpop.f32.mrf.mxu0
    %v262 = vadd.f32 0.0, %v261
    %v263 = vpop.f32.mrf.mxu0
    %v264 = vpop.f32.mrf.mxu0
    %v265 = vpop.f32.mrf.mxu0
    %266 = vdwg.mxu0
    %v267 = vxor.u32 %v262, 2147483648
    %v268 = vmul.f32 %v267, 1.442695
    %v269 = vpow.pop %v268
    %v270 = vadd.f32 %v269, 1.0
    %v271 = vrcp.pop %v270
    %v272 = vmul.f32 1.0, %v271
    %v273 = vmul.f32 %v55, %v272
    %274 = vst [vmem:[#allocation8] sm:$0xff] %v273
    // Predicated region
    $region26: #{tpu_custom_call.1} parent=1 // pred_check
      _
    $region27: #{tpu_custom_call.1} parent=1 // pred_check_branch
      %276 = sbr.rel (0) target = $region29
    $region28: #{tpu_custom_call.1} parent=1 // pred_region
      %s278 = ssub.s32 128, 128
      %279 = vsyncadd [#allocation4], %s278
      %s281 = sshll.u32 [#allocation8], 4
      %s282 = int_to_ptr.vmem [resolvable:$true] %s281
      %284 = dma.vmem_to_hbm [thread:$0]  %s282, 128, %s3, [#allocation4]
    $region29: #{tpu_custom_call.1} parent=1 // pred_fallthru
      _
    // Predicated region
    $region30: #{tpu_custom_call.1} parent=1 // pred_check
      _
    $region31: #{tpu_custom_call.1} parent=1 // pred_check_branch
      %286 = sbr.rel (0) target = $region33
    $region32: #{tpu_custom_call.1} parent=1 // pred_region
      %287 = dma.done [#allocation4], 128
    $region33: #{tpu_custom_call.1} parent=1 // pred_fallthru
      _
    %288 = vsyncpa [#allocation3], 1
    %289 = vsyncpa [#allocation6], 1
    %290 = vsyncpa [#allocation4], 1

</llo_original>
